<compile_context>
chip_gen: v5e
topology: v5e:2x2
jax: 0.10.0
libtpu: 0.0.40
codegen_flags: <defaults>
</compile_context>

<pallas_src>
import functools

import jax
import jax.numpy as jnp
from jax.experimental import pallas as pl
from jax.experimental.pallas import tpu as pltpu

_LANE = 128


def _oicr_loss_kernel(prob_ref, labels_ref, w_ref, out_ref, *, eps):
    """Accumulate sum over (class, row) of w * labels * log(prob + eps).

    prob_ref/labels_ref: (C, TN) lane-dense tiles; w_ref: (1, TN) row.
    out_ref: (1, C, 128) lane-partial accumulator, resident across the
    reduction grid axis (axis 1).
    """
    t = pl.program_id(1)

    @pl.when(t == 0)
    def _():
        out_ref[...] = jnp.zeros_like(out_ref)

    p = prob_ref[...].astype(jnp.float32)        # (C, TN)
    lab = labels_ref[...].astype(jnp.float32)    # (C, TN)
    w = w_ref[...].astype(jnp.float32)           # (1, TN) -> sublane broadcast

    # Fused weighted elementwise term: pure VPU muls + one EUP log per element.
    term = (w * lab) * jnp.log(p + eps)          # (C, TN)

    # Fold lane groups into a single (C, 128) partial with plain VPU adds.
    # Slices at 128-lane boundaries keep lanes in place (no relayout).
    tn = term.shape[-1]
    acc = term[:, 0:_LANE]
    for g in range(1, tn // _LANE):
        acc = acc + term[:, g * _LANE:(g + 1) * _LANE]

    out_ref[...] += acc[None, :, :]


def _round_up(x, m):
    return (x + m - 1) // m * m


def oicr_losses(prob, labels_ic, cls_loss_weights, eps=1e-6,
                max_tile_n=2048, num_chunks=2):
    """prob: (N, C), labels_ic: (N, C), cls_loss_weights: (N,) -> scalar f32."""
    N, C = prob.shape
    assert labels_ic.shape == (N, C)
    assert cls_loss_weights.shape == (N,)
    assert max_tile_n % _LANE == 0 and max_tile_n > 0

    # Bucket the padded row count to a small set of sizes so varying proposal
    # counts reuse a handful of compiled pallas_call variants.
    if N <= 512:
        n_pad = _round_up(max(N, 1), _LANE)
    else:
        n_pad = _round_up(N, 512)

    if n_pad <= max_tile_n:
        tile_n = n_pad
    else:
        tile_n = max_tile_n
        n_pad = _round_up(n_pad, tile_n)
    n_tiles = n_pad // tile_n

    # Optional leading 'parallel' axis so v7x's two TensorCores split the row
    # tiles in the multi-tile regime; no-op (n_chunks=1) for single-tile shapes.
    if num_chunks > 1 and n_tiles % num_chunks == 0 and n_tiles > 1:
        n_chunks = num_chunks
    else:
        n_chunks = 1
    tiles_per_chunk = n_tiles // n_chunks

    # Lane-dense (C, N) layout; keep native dtype (kernel upcasts). Weights
    # become a (1, N) lane-dense row (contiguous DMA, sublane broadcast).
    prob_t = jnp.transpose(prob)                        # (C, N)
    lab_t = jnp.transpose(labels_ic)                    # (C, N)
    w_row = cls_loss_weights.reshape(1, N)              # (1, N)

    pad = n_pad - N
    if pad:
        # Zero labels & weights on padded rows -> they contribute exactly 0.
        prob_t = jnp.pad(prob_t, ((0, 0), (0, pad)), constant_values=1)
        lab_t = jnp.pad(lab_t, ((0, 0), (0, pad)))
        w_row = jnp.pad(w_row, ((0, 0), (0, pad)))

    kernel = functools.partial(_oicr_loss_kernel, eps=float(eps))
    col_map = lambda c, t: (0, c * tiles_per_chunk + t)

    partials = pl.pallas_call(
        kernel,
        out_shape=jax.ShapeDtypeStruct((n_chunks, C, _LANE), jnp.float32),
        grid_spec=pltpu.PrefetchScalarGridSpec(
            num_scalar_prefetch=0,
            grid=(n_chunks, tiles_per_chunk),
            in_specs=[
                pl.BlockSpec((C, tile_n), col_map),
                pl.BlockSpec((C, tile_n), col_map),
                pl.BlockSpec((1, tile_n), col_map),
            ],
            out_specs=pl.BlockSpec((1, C, _LANE), lambda c, t: (c, 0, 0)),
        ),
        compiler_params=pltpu.CompilerParams(
            dimension_semantics=("parallel", "arbitrary"),
        ),
    )(prob_t, lab_t, w_row)

    # Tiny final reduce + negate + mean over the ORIGINAL N.
    return -jnp.sum(partials) / jnp.float32(N)


def _reference(prob, labels_ic, cls_loss_weights, eps=1e-6):
    loss = labels_ic * jnp.log(prob + eps)
    loss = loss.sum(axis=1)
    loss = -cls_loss_weights * loss
    return loss.sum() / loss.size


def _make_inputs(key, N, C):
    k1, k2, k3 = jax.random.split(key, 3)
    logits = jax.random.normal(k1, (N, C), dtype=jnp.float32)
    prob = jax.nn.softmax(logits, axis=1)
    label_idx = jax.random.randint(k2, (N,), 0, C)
    labels_ic = jax.nn.one_hot(label_idx, C, dtype=jnp.float32)
    cls_loss_weights = jax.random.uniform(k3, (N,), dtype=jnp.float32)
    return prob, labels_ic, cls_loss_weights


if __name__ == "__main__":
    key = jax.random.PRNGKey(0)
    k0, k1, k2 = jax.random.split(key, 3)

    C = 21  # 20 classes + background

    # Case 1: typical small shape -> single grid step, single chunk.
    prob, lab, w = _make_inputs(k0, 128, C)
    out = jax.block_until_ready(oicr_losses(prob, lab, w))
    ref = _reference(prob, lab, w)
    assert jnp.allclose(out, ref, rtol=1e-5, atol=1e-5), (out, ref)

    # Case 2: ragged N (not a multiple of 128) -> exercises the padding path.
    prob2, lab2, w2 = _make_inputs(k1, 90, C)
    out2 = jax.block_until_ready(oicr_losses(prob2, lab2, w2))
    ref2 = _reference(prob2, lab2, w2)
    assert jnp.allclose(out2, ref2, rtol=1e-5, atol=1e-5), (out2, ref2)

    # Case 3: larger ragged N with small tiles -> multi-tile reduction plus a
    # 2-way 'parallel' chunk axis (per-chunk lane-partials combined in wrapper).
    prob3, lab3, w3 = _make_inputs(k2, 600, C)
    out3 = jax.block_until_ready(oicr_losses(prob3, lab3, w3, max_tile_n=256))
    ref3 = _reference(prob3, lab3, w3)
    assert jnp.allclose(out3, ref3, rtol=1e-5, atol=1e-5), (out3, ref3)

    print("KERNEL_OK")
</pallas_src>

<mosaic_0001>
module attributes {stable_mosaic.version = 11 : i64} {
  func.func @_oicr_loss_kernel(%arg0: i32, %arg1: i32, %arg2: memref<21x128xf32, #tpu.memory_space<vmem>>, %arg3: memref<21x128xf32, #tpu.memory_space<vmem>>, %arg4: memref<1x128xf32, #tpu.memory_space<vmem>>, %arg5: memref<1x21x128xf32, #tpu.memory_space<vmem>>) attributes {dimension_semantics = [#tpu.dimension_semantics<parallel>, #tpu.dimension_semantics<arbitrary>], iteration_bounds = array<i64: 1, 1>, scalar_prefetch = 0 : i64, scratch_operands = 0 : i64, tpu.core_type = #tpu.core_type<tc>, window_params = [{transform_indices = @transform_0, window_bounds = array<i64: 21, 128>}, {transform_indices = @transform_1, window_bounds = array<i64: 21, 128>}, {transform_indices = @transform_2, window_bounds = array<i64: 1, 128>}, {transform_indices = @transform_3, window_bounds = array<i64: 1, 21, 128>}]} {
    %c0_i32 = arith.constant 0 : i32
    %0 = arith.cmpi eq, %arg1, %c0_i32 : i32
    %1 = arith.extui %0 : i1 to i32
    %c0_i32_0 = arith.constant 0 : i32
    %2 = arith.cmpi ne, %1, %c0_i32_0 : i32
    scf.if %2 {
      %cst_12 = arith.constant 0.000000e+00 : f32
      %16 = vector.broadcast %cst_12 : f32 to vector<1x21x128xf32>
      %c0_13 = arith.constant 0 : index
      %c0_14 = arith.constant 0 : index
      %c0_15 = arith.constant 0 : index
      %17 = vector.load %arg5[%c0_13, %c0_14, %c0_15] : memref<1x21x128xf32, #tpu.memory_space<vmem>>, vector<1x21x128xf32>
      tpu.vector_store %arg5[%c0_13, %c0_14, %c0_15], %16 {strides = array<i32>} : memref<1x21x128xf32, #tpu.memory_space<vmem>>, vector<1x21x128xf32>,
    } else {
    }
    %c0 = arith.constant 0 : index
    %c0_1 = arith.constant 0 : index
    %3 = vector.load %arg2[%c0, %c0_1] : memref<21x128xf32, #tpu.memory_space<vmem>>, vector<21x128xf32>
    %c0_2 = arith.constant 0 : index
    %c0_3 = arith.constant 0 : index
    %4 = vector.load %arg3[%c0_2, %c0_3] : memref<21x128xf32, #tpu.memory_space<vmem>>, vector<21x128xf32>
    %c0_4 = arith.constant 0 : index
    %c0_5 = arith.constant 0 : index
    %5 = vector.load %arg4[%c0_4, %c0_5] : memref<1x128xf32, #tpu.memory_space<vmem>>, vector<1x128xf32>
    %6 = vector.broadcast %5 : vector<1x128xf32> to vector<21x128xf32>
    %7 = arith.mulf %6, %4 : vector<21x128xf32>
    %cst = arith.constant 9.99999997E-7 : f32
    %8 = vector.broadcast %cst : f32 to vector<21x128xf32>
    %9 = arith.addf %3, %8 : vector<21x128xf32>
    %10 = math.log %9 : vector<21x128xf32>
    %11 = arith.mulf %7, %10 : vector<21x128xf32>
    %c0_6 = arith.constant 0 : index
    %c0_7 = arith.constant 0 : index
    %c0_8 = arith.constant 0 : index
    %12 = vector.load %arg5[%c0_6, %c0_7, %c0_8] : memref<1x21x128xf32, #tpu.memory_space<vmem>>, vector<1x21x128xf32>
    %13 = vector.shape_cast %11 : vector<21x128xf32> to vector<1x21x128xf32>
    %14 = arith.addf %12, %13 : vector<1x21x128xf32>
    %c0_9 = arith.constant 0 : index
    %c0_10 = arith.constant 0 : index
    %c0_11 = arith.constant 0 : index
    %15 = vector.load %arg5[%c0_9, %c0_10, %c0_11] : memref<1x21x128xf32, #tpu.memory_space<vmem>>, vector<1x21x128xf32>
    tpu.vector_store %arg5[%c0_9, %c0_10, %c0_11], %14 {strides = array<i32>} : memref<1x21x128xf32, #tpu.memory_space<vmem>>, vector<1x21x128xf32>,
    return
  }
  func.func @transform_0(%arg0: i32, %arg1: i32) -> (i32, i32) {
    %c1_i32 = arith.constant 1 : i32
    %0 = arith.muli %arg0, %c1_i32 : i32
    %1 = arith.addi %0, %arg1 : i32
    %c0_i32 = arith.constant 0 : i32
    %c0_i32_0 = arith.constant 0 : i32
    return %c0_i32, %1 : i32, i32
  }
  func.func @transform_1(%arg0: i32, %arg1: i32) -> (i32, i32) {
    %c1_i32 = arith.constant 1 : i32
    %0 = arith.muli %arg0, %c1_i32 : i32
    %1 = arith.addi %0, %arg1 : i32
    %c0_i32 = arith.constant 0 : i32
    %c0_i32_0 = arith.constant 0 : i32
    return %c0_i32, %1 : i32, i32
  }
  func.func @transform_2(%arg0: i32, %arg1: i32) -> (i32, i32) {
    %c1_i32 = arith.constant 1 : i32
    %0 = arith.muli %arg0, %c1_i32 : i32
    %1 = arith.addi %0, %arg1 : i32
    %c0_i32 = arith.constant 0 : i32
    %c0_i32_0 = arith.constant 0 : i32
    return %c0_i32, %1 : i32, i32
  }
  func.func @transform_3(%arg0: i32, %arg1: i32) -> (i32, i32, i32) {
    %c0_i32 = arith.constant 0 : i32
    %c0_i32_0 = arith.constant 0 : i32
    %c0_i32_1 = arith.constant 0 : i32
    return %arg0, %c0_i32, %c0_i32_0 : i32, i32, i32
  }
}

</mosaic_0001>

<llo_original>
// kernel: tpu_custom_call.1
$region0: #{tpu_custom_call.1}
  #allocation0 [shape = 'u32[]', space=smem, size = 0x4, offset = 0x4, fixed_abs, tag = 'smem constant byte address 0x4 - core index']
  #allocation1 [shape = 'u32[72,128]{1,0:T(1,128)}', space=vmem, size = 0x9000, scoped, tag = 'internal scratch']
  %s0 = inlined_call_operand.hbm [shape: f32[21,128], index: 0, kind: input, shape index: {}]
  %s1 = inlined_call_operand.hbm [shape: f32[21,128], index: 1, kind: input, shape index: {}]
  %s2 = inlined_call_operand.vmem [shape: f32[1,128], index: 2, kind: input, shape index: {}]
  %s3 = inlined_call_operand.vmem [shape: f32[1,21,128], index: 3, kind: output, shape index: {}]
  %s4 = sld [smem:[#allocation0]]
  $region34: #{tpu_custom_call.1} parent=0
    _
  %s6 = ssub.s32 1, %s4
  %s7 = scalar_select 0, %s6, %s4
  $region1: #{tpu_custom_call.1} parent=0
    #allocation2 [shape = 'u8[12288]{0}', space=vmem, size = 0x3000, scoped, tag = 'input window, operand 0, single buffered']
    #allocation3 [shape = 's32[1]{0}', space=sflag, size = 0x4, scoped, tag = 'scoped memory for tpu_custom_call.1']
    #allocation4 [shape = 'u8[12288]{0}', space=vmem, size = 0x3000, scoped, tag = 'input window, operand 1, single buffered']
    #allocation5 [shape = 's32[1]{0}', space=sflag, size = 0x4, scoped, tag = 'scoped memory for tpu_custom_call.1']
    %8 = vsyncpa [#allocation3], 0
    %9 = vsyncpa [#allocation5], 0
    // Predicated region
    $region2: #{tpu_custom_call.1} parent=1 // pred_check
      _
    $region3: #{tpu_custom_call.1} parent=1 // pred_check_branch
      %11 = sbr.rel (0) target = $region5
    $region4: #{tpu_custom_call.1} parent=1 // pred_region
      %s12 = sadd.s32 0, 0
      %14 = vsyncadd [#allocation3], 0
      %s15 = smul.addr %s12, 8
      %s16 = scalar_lea.hbm %s0, %s15
      %s17 = sshll.u32 %s16, 4
      %s18 = int_to_ptr.hbm [resolvable:$true] %s17
      %s19 = sshll.u32 [#allocation2], 4
      %s20 = int_to_ptr.vmem [resolvable:$true] %s19
      %25 = dma.hbm_to_vmem [thread:$0]  %s18, 384, %s20, [#allocation3], 128, 128, 8
    $region5: #{tpu_custom_call.1} parent=1 // pred_fallthru
      _
    // Predicated region
    $region6: #{tpu_custom_call.1} parent=1 // pred_check
      _
    $region7: #{tpu_custom_call.1} parent=1 // pred_check_branch
      %27 = sbr.rel (0) target = $region9
    $region8: #{tpu_custom_call.1} parent=1 // pred_region
      %s28 = sadd.s32 0, 0
      %30 = vsyncadd [#allocation5], 0
      %s31 = smul.addr %s28, 8
      %s32 = scalar_lea.hbm %s1, %s31
      %s33 = sshll.u32 %s32, 4
      %s34 = int_to_ptr.hbm [resolvable:$true] %s33
      %s35 = sshll.u32 [#allocation4], 4
      %s36 = int_to_ptr.vmem [resolvable:$true] %s35
      %41 = dma.hbm_to_vmem [thread:$0]  %s34, 384, %s36, [#allocation5], 128, 128, 8
    $region9: #{tpu_custom_call.1} parent=1 // pred_fallthru
      _
    // Predicated region
    $region10: #{tpu_custom_call.1} parent=1 // pred_check
      _
    $region11: #{tpu_custom_call.1} parent=1 // pred_check_branch
      %43 = sbr.rel (0) target = $region13
    $region12: #{tpu_custom_call.1} parent=1 // pred_region
      %s44 = sadd.s32 0, 0
      %p45 = scmp.lt.s32.totalorder %s44, 0
      %s46 = scalar_select %p45, %s44, 0
      %s47 = scalar_lea.vmem %s2, %s46
      %s48 = sadd.s32 0, 0
    $region13: #{tpu_custom_call.1} parent=1 // pred_fallthru
      _
    // Predicated region
    $region14: #{tpu_custom_call.1} parent=1 // pred_check
      _
    $region15: #{tpu_custom_call.1} parent=1 // pred_check_branch
      %50 = sbr.rel (0) target = $region17
    $region16: #{tpu_custom_call.1} parent=1 // pred_region
      %52 = dma.done [#allocation3], 384
    $region17: #{tpu_custom_call.1} parent=1 // pred_fallthru
      _
    // Predicated region
    $region18: #{tpu_custom_call.1} parent=1 // pred_check
      _
    $region19: #{tpu_custom_call.1} parent=1 // pred_check_branch
      %54 = sbr.rel (0) target = $region21
    $region20: #{tpu_custom_call.1} parent=1 // pred_region
      %56 = dma.done [#allocation5], 384
    $region21: #{tpu_custom_call.1} parent=1 // pred_fallthru
      _
    %s57 = sadd.s32 0, 0
    %p58 = scmp.lt.s32.totalorder %s57, 0
    %s59 = scalar_select %p58, %s57, 0
    %s60 = scalar_lea.vmem %s2, %s59
    %s61 = sadd.s32 0, 0
    %s62 = sadd.s32 0, 0
    %s63 = sadd.s32 0, 0
    %p64 = scmp.lt.s32.totalorder %s63, 0
    %s65 = scalar_select %p64, %s63, 0
    %s66 = scalar_lea.vmem %s2, %s65
    %s67 = sadd.s32 0, 0
    %p68 = scmp.eq.s32.totalorder 0, 0
    // Predicated region
    $region22: #{tpu_custom_call.1} parent=1 // pred_check
      %p69 = pneg %p68
    $region23: #{tpu_custom_call.1} parent=1 // pred_check_branch
      %71 = sbr.rel (%p69) target = $region25
    $region24: #{tpu_custom_call.1} parent=1 // pred_region
      %72 = vst [vmem:[%s3] sm:$0xff] 0.0
      %73 = vst [vmem:[%s3 + $0x8] sm:$0xff] 0.0
      %74 = vst [vmem:[%s3 + $0x10] sm:$0x1f] 0.0
    $region25: #{tpu_custom_call.1} parent=1 // pred_fallthru
      _
    %v75 = vld [vmem:[#allocation2] sm:$0xff]
    %v76 = vld [vmem:[#allocation2 + $0x8] sm:$0xff]
    %v77 = vld [vmem:[#allocation2 + $0x10] sm:$0x1f]
    %v78 = vld [vmem:[#allocation4] sm:$0xff]
    %v79 = vld [vmem:[#allocation4 + $0x8] sm:$0xff]
    %v80 = vld [vmem:[#allocation4 + $0x10] sm:$0x1f]
    %v81 = vld [vmem:[%s66] sm:$0x1]
    %v83 = vperm.slane %v81, 0
    %v85 = vmul.f32 %v83, %v78
    %v86 = vmul.f32 %v83, %v79
    %v87 = vmul.f32 %v83, %v80
    %v88 = vadd.f32 %v75, 1e-06
    %v89 = vadd.f32 %v76, 1e-06
    %v90 = vadd.f32 %v77, 1e-06
    %v91 = vlog2.pop %v88
    %v92 = vmul.f32 %v91, 0.6931472
    %v93 = vlog2.pop %v89
    %v94 = vmul.f32 %v93, 0.6931472
    %v95 = vlog2.pop %v90
    %v96 = vmul.f32 %v95, 0.6931472
    %v97 = vmul.f32 %v85, %v92
    %v98 = vmul.f32 %v86, %v94
    %v99 = vmul.f32 %v87, %v96
    %v100 = vld [vmem:[%s3] sm:$0xff]
    %v101 = vld [vmem:[%s3 + $0x8] sm:$0xff]
    %v102 = vld [vmem:[%s3 + $0x10] sm:$0x1f]
    %v103 = vadd.f32 %v100, %v97
    %v104 = vadd.f32 %v101, %v98
    %v105 = vadd.f32 %v102, %v99
    %106 = vst [vmem:[%s3] sm:$0xff] %v103
    %107 = vst [vmem:[%s3 + $0x8] sm:$0xff] %v104
    %108 = vst [vmem:[%s3 + $0x10] sm:$0x1f] %v105
    // Predicated region
    $region26: #{tpu_custom_call.1} parent=1 // pred_check
      _
    $region27: #{tpu_custom_call.1} parent=1 // pred_check_branch
      %110 = sbr.rel (0) target = $region29
    $region28: #{tpu_custom_call.1} parent=1 // pred_region
      _
    $region29: #{tpu_custom_call.1} parent=1 // pred_fallthru
      _
    // Predicated region
    $region30: #{tpu_custom_call.1} parent=1 // pred_check
      _
    $region31: #{tpu_custom_call.1} parent=1 // pred_check_branch
      %112 = sbr.rel (0) target = $region33
    $region32: #{tpu_custom_call.1} parent=1 // pred_region
      _
    $region33: #{tpu_custom_call.1} parent=1 // pred_fallthru
      _
    %113 = vsyncpa [#allocation3], 1
    %114 = vsyncpa [#allocation5], 1

</llo_original>
